<compile_context>
chip_gen: v5e
topology: v5e:2x2
jax: 0.10.0
libtpu: 0.0.40
codegen_flags: <defaults>
</compile_context>

<pallas_src>
import functools

import jax
import jax.numpy as jnp
from jax.experimental import pallas as pl
from jax.experimental.pallas import tpu as pltpu


def _round_up(v: int, m: int) -> int:
    return (v + m - 1) // m * m


def _linear_relu_kernel(x_ref, w_ref, b_ref, o_ref):
    """Fused Linear + bias + ReLU on one VMEM-resident block.

    x_ref: (tm, Kp) bf16, w_ref: (Kp, Np) bf16 (resident across grid steps),
    b_ref: (1, Np) f32, o_ref: (tm, Np) f32.
    """
    acc = jnp.dot(x_ref[...], w_ref[...], preferred_element_type=jnp.float32)
    acc = acc + b_ref[...]                       # (1, Np) broadcasts over rows
    o_ref[...] = jnp.maximum(acc, 0.0).astype(o_ref.dtype)


@functools.partial(jax.jit, static_argnames=("row_tile",))
def torchscript_wrapper_forward(x, w, b, *, row_tile: int = 256):
    """Equivalent of TorchScriptWrapper(model).forward(x) for the inner
    Linear(K, N) + ReLU model.

    x: (M, K) f32, w: (K, N) f32 (stored as W^T of torch's (out, in)),
    b: (N,) f32.  Returns (M, N) f32.
    """
    M, K = x.shape
    Kw, N = w.shape
    assert K == Kw and b.shape == (N,)

    # ---- lane-dense padding: K, N -> multiples of 128 --------------------
    Kp = _round_up(K, 128)
    Np = _round_up(N, 128)

    # ---- batch tiling: tm multiple of 16 (bf16 sublane pack), Mp % tm == 0
    tm = min(row_tile, _round_up(M, 16))
    Mp = _round_up(M, tm)

    # Zero padding along K contributes 0 to the dot product; padded N columns
    # get a zero bias, so relu(0) = 0 there and we slice them away afterwards.
    x_p = jnp.pad(x, ((0, Mp - M), (0, Kp - K))).astype(jnp.bfloat16)
    w_p = jnp.pad(w, ((0, Kp - K), (0, Np - N))).astype(jnp.bfloat16)
    b_p = jnp.pad(b, (0, Np - N)).astype(jnp.float32).reshape(1, Np)

    grid = (Mp // tm,)

    flops = 2 * Mp * Kp * Np
    bytes_accessed = (
        x_p.size * x_p.dtype.itemsize
        + w_p.size * w_p.dtype.itemsize
        + b_p.size * b_p.dtype.itemsize
        + Mp * Np * 4  # f32 output
    )

    out_p = pl.pallas_call(
        _linear_relu_kernel,
        out_shape=jax.ShapeDtypeStruct((Mp, Np), jnp.float32),
        grid=grid,
        in_specs=[
            pl.BlockSpec((tm, Kp), lambda i: (i, 0)),   # x: streamed per step
            pl.BlockSpec((Kp, Np), lambda i: (0, 0)),   # w: VMEM-resident
            pl.BlockSpec((1, Np), lambda i: (0, 0)),    # b: VMEM-resident
        ],
        out_specs=pl.BlockSpec((tm, Np), lambda i: (i, 0)),
        compiler_params=pltpu.CompilerParams(
            # Batch axis is embarrassingly parallel -> shard across the two
            # TensorCores on v7x; neutral (single TC) on v5e/v6e.
            dimension_semantics=("parallel",),
        ),
        cost_estimate=pl.CostEstimate(
            flops=flops, transcendentals=0, bytes_accessed=bytes_accessed
        ),
    )(x_p, w_p, b_p)

    return out_p[:M, :N]


if __name__ == "__main__":
    # Small shapes consistent with the (generic) forward: batch=8, hidden=32.
    M, K, N = 8, 32, 32

    key = jax.random.PRNGKey(0)
    kx, kw, kb = jax.random.split(key, 3)

    x = jax.random.normal(kx, (M, K), dtype=jnp.float32)
    # Deterministic parameter init (synthetic; no checkpoint load).
    w = jax.random.normal(kw, (K, N), dtype=jnp.float32) * 0.1
    b = jax.random.normal(kb, (N,), dtype=jnp.float32) * 0.1

    y = torchscript_wrapper_forward(x, w, b)
    jax.block_until_ready(y)

    # Reference check: same math with the same bf16 input quantization the
    # kernel uses (f32 accumulation), so tolerances stay tight.
    x_bf = x.astype(jnp.bfloat16).astype(jnp.float32)
    w_bf = w.astype(jnp.bfloat16).astype(jnp.float32)
    y_ref = jnp.maximum(x_bf @ w_bf + b, 0.0)
    assert y.shape == (M, N)
    assert jnp.allclose(y, y_ref, atol=1e-4, rtol=1e-4), "mismatch vs reference"

    print("KERNEL_OK")
</pallas_src>

<mosaic_0001>
module attributes {stable_mosaic.version = 11 : i64} {
  func.func @_linear_relu_kernel(%arg0: i32, %arg1: memref<16x128xbf16, #tpu.memory_space<vmem>>, %arg2: memref<128x128xbf16, #tpu.memory_space<vmem>>, %arg3: memref<1x128xf32, #tpu.memory_space<vmem>>, %arg4: memref<16x128xf32, #tpu.memory_space<vmem>>) attributes {dimension_semantics = [#tpu.dimension_semantics<parallel>], iteration_bounds = array<i64: 1>, scalar_prefetch = 0 : i64, scratch_operands = 0 : i64, tpu.core_type = #tpu.core_type<tc>, window_params = [{transform_indices = @transform_0, window_bounds = array<i64: 16, 128>}, {pipeline_mode = #tpu.pipeline_mode<synchronous>, transform_indices = @transform_1, window_bounds = array<i64: 128, 128>}, {pipeline_mode = #tpu.pipeline_mode<synchronous>, transform_indices = @transform_2, window_bounds = array<i64: 1, 128>}, {transform_indices = @transform_3, window_bounds = array<i64: 16, 128>}]} {
    %c0 = arith.constant 0 : index
    %c0_0 = arith.constant 0 : index
    %0 = vector.load %arg1[%c0, %c0_0] : memref<16x128xbf16, #tpu.memory_space<vmem>>, vector<16x128xbf16>
    %c0_1 = arith.constant 0 : index
    %c0_2 = arith.constant 0 : index
    %1 = vector.load %arg2[%c0_1, %c0_2] : memref<128x128xbf16, #tpu.memory_space<vmem>>, vector<128x128xbf16>
    %cst = arith.constant dense<0.000000e+00> : vector<16x128xf32>
    %2 = tpu.matmul %0, %1, %cst {dimension_numbers = #tpu.dot_dimension_numbers<[1], [0], [0], [1], [0, 0, 1, 1], [], []>} : vector<16x128xbf16>, vector<128x128xbf16>, vector<16x128xf32> -> vector<16x128xf32>
    %c0_3 = arith.constant 0 : index
    %c0_4 = arith.constant 0 : index
    %3 = vector.load %arg3[%c0_3, %c0_4] : memref<1x128xf32, #tpu.memory_space<vmem>>, vector<1x128xf32>
    %4 = vector.broadcast %3 : vector<1x128xf32> to vector<16x128xf32>
    %5 = arith.addf %2, %4 : vector<16x128xf32>
    %cst_5 = arith.constant 0.000000e+00 : f32
    %6 = vector.broadcast %cst_5 : f32 to vector<16x128xf32>
    %7 = arith.maximumf %5, %6 : vector<16x128xf32>
    %c0_6 = arith.constant 0 : index
    %c0_7 = arith.constant 0 : index
    %8 = vector.load %arg4[%c0_6, %c0_7] : memref<16x128xf32, #tpu.memory_space<vmem>>, vector<16x128xf32>
    tpu.vector_store %arg4[%c0_6, %c0_7], %7 {strides = array<i32>} : memref<16x128xf32, #tpu.memory_space<vmem>>, vector<16x128xf32>,
    return
  }
  func.func @transform_0(%arg0: i32) -> (i32, i32) {
    %c0_i32 = arith.constant 0 : i32
    %c0_i32_0 = arith.constant 0 : i32
    return %arg0, %c0_i32 : i32, i32
  }
  func.func @transform_1(%arg0: i32) -> (i32, i32) {
    %c0_i32 = arith.constant 0 : i32
    %c0_i32_0 = arith.constant 0 : i32
    %c0_i32_1 = arith.constant 0 : i32
    return %c0_i32, %c0_i32_0 : i32, i32
  }
  func.func @transform_2(%arg0: i32) -> (i32, i32) {
    %c0_i32 = arith.constant 0 : i32
    %c0_i32_0 = arith.constant 0 : i32
    %c0_i32_1 = arith.constant 0 : i32
    return %c0_i32, %c0_i32_0 : i32, i32
  }
  func.func @transform_3(%arg0: i32) -> (i32, i32) {
    %c0_i32 = arith.constant 0 : i32
    %c0_i32_0 = arith.constant 0 : i32
    return %arg0, %c0_i32 : i32, i32
  }
}

</mosaic_0001>

<llo_original>
// kernel: torchscript_wrapper_forward.1
$region0: #{torchscript_wrapper_forward.1}
  #allocation0 [shape = 'u32[]', space=smem, size = 0x4, offset = 0x4, fixed_abs, tag = 'smem constant byte address 0x4 - core index']
  #allocation1 [shape = 'u32[72,128]{1,0:T(1,128)}', space=vmem, size = 0x9000, scoped, tag = 'internal scratch']
  %s0 = inlined_call_operand.vmem [shape: bf16[16,128], index: 0, kind: input, shape index: {}]
  %s1 = inlined_call_operand.vmem [shape: bf16[128,128], index: 1, kind: input, shape index: {}]
  %s2 = inlined_call_operand.vmem [shape: f32[1,128], index: 2, kind: input, shape index: {}]
  %s3 = inlined_call_operand.vmem [shape: f32[16,128], index: 3, kind: output, shape index: {}]
  %s4 = sld [smem:[#allocation0]]
  $region22: #{torchscript_wrapper_forward.1} parent=0
    _
  %s6 = ssub.s32 1, %s4
  %s7 = scalar_select 0, %s6, %s4
  // Predicated region
  $region2: #{torchscript_wrapper_forward.1} parent=0 // pred_check
    _
  $region3: #{torchscript_wrapper_forward.1} parent=0 // pred_check_branch
    %9 = sbr.rel (0) target = $region5
  $region4: #{torchscript_wrapper_forward.1} parent=0 // pred_region
    _
  $region5: #{torchscript_wrapper_forward.1} parent=0 // pred_fallthru
    _
  // Predicated region
  $region6: #{torchscript_wrapper_forward.1} parent=0 // pred_check
    _
  $region7: #{torchscript_wrapper_forward.1} parent=0 // pred_check_branch
    %11 = sbr.rel (0) target = $region9
  $region8: #{torchscript_wrapper_forward.1} parent=0 // pred_region
    _
  $region9: #{torchscript_wrapper_forward.1} parent=0 // pred_fallthru
    _
  // Predicated region
  $region10: #{torchscript_wrapper_forward.1} parent=0 // pred_check
    _
  $region11: #{torchscript_wrapper_forward.1} parent=0 // pred_check_branch
    %13 = sbr.rel (0) target = $region13
  $region12: #{torchscript_wrapper_forward.1} parent=0 // pred_region
    _
  $region13: #{torchscript_wrapper_forward.1} parent=0 // pred_fallthru
    _
  %v14 = vld [vmem:[%s0] sm:$0xf]
  %v15 = vld [vmem:[%s0 + $0x4] sm:$0xf]
  %v16 = vld [vmem:[%s1] sm:$0xf]
  %v17 = vld [vmem:[%s1 + $0x4] sm:$0xf]
  %v18 = vld [vmem:[%s1 + $0x8] sm:$0xf]
  %v19 = vld [vmem:[%s1 + $0xc] sm:$0xf]
  %v20 = vld [vmem:[%s1 + $0x10] sm:$0xf]
  %v21 = vld [vmem:[%s1 + $0x14] sm:$0xf]
  %v22 = vld [vmem:[%s1 + $0x18] sm:$0xf]
  %v23 = vld [vmem:[%s1 + $0x1c] sm:$0xf]
  %v24 = vld [vmem:[%s1 + $0x20] sm:$0xf]
  %v25 = vld [vmem:[%s1 + $0x24] sm:$0xf]
  %v26 = vld [vmem:[%s1 + $0x28] sm:$0xf]
  %v27 = vld [vmem:[%s1 + $0x2c] sm:$0xf]
  %v28 = vld [vmem:[%s1 + $0x30] sm:$0xf]
  %v29 = vld [vmem:[%s1 + $0x34] sm:$0xf]
  %v30 = vld [vmem:[%s1 + $0x38] sm:$0xf]
  %v31 = vld [vmem:[%s1 + $0x3c] sm:$0xf]
  %v32 = vld [vmem:[%s2] sm:$0x1]
  %v34 = vperm.slane %v32, 0
  %v38 = vunpack.c.l.b16 %v14
  %v39 = vunpack.c.l.b16 %v15
  %v40 = vpack.c.b16 %v39, %v38
  %v58 = vunpack.c.l.b16 %v16
  %v59 = vunpack.c.l.b16 %v17
  %v60 = vunpack.c.l.b16 %v18
  %v61 = vunpack.c.l.b16 %v19
  %v62 = vunpack.c.l.b16 %v20
  %v63 = vunpack.c.l.b16 %v21
  %v64 = vunpack.c.l.b16 %v22
  %v65 = vunpack.c.l.b16 %v23
  %v66 = vunpack.c.l.b16 %v24
  %v67 = vunpack.c.l.b16 %v25
  %v68 = vunpack.c.l.b16 %v26
  %v69 = vunpack.c.l.b16 %v27
  %v70 = vunpack.c.l.b16 %v28
  %v71 = vunpack.c.l.b16 %v29
  %v72 = vunpack.c.l.b16 %v30
  %v73 = vunpack.c.l.b16 %v31
  %v74 = vpack.c.b16 %v59, %v58
  %v75 = vpack.c.b16 %v61, %v60
  %v76 = vpack.c.b16 %v63, %v62
  %v77 = vpack.c.b16 %v65, %v64
  %v78 = vpack.c.b16 %v67, %v66
  %v79 = vpack.c.b16 %v69, %v68
  %v80 = vpack.c.b16 %v71, %v70
  %v81 = vpack.c.b16 %v73, %v72
  %90 = vmatpush.bf16.msra.mxu0 %v81
  %91 = vmatpush.bf16.msra.mxu0 %v80
  %92 = vmatpush.bf16.msra.mxu0 %v79
  %93 = vmatpush.bf16.msra.mxu0 %v78
  %94 = vmatpush.bf16.msra.mxu0 %v77
  %95 = vmatpush.bf16.msra.mxu0 %v76
  %96 = vmatpush.bf16.msra.mxu0 %v75
  %97 = vmatpush.bf16.msra.mxu0 %v74
  %98 = vmatmul.bf16.gmra.mxu0 %v40
  %v99 = vpop.f32.mrf.mxu0
  %v100 = vadd.f32 %v34, %v99
  %v101 = vpop.f32.mrf.mxu0
  %v102 = vadd.f32 %v34, %v101
  %103 = vdwg.mxu0
  %v104 = vmax.f32 %v100, 0.0
  %v105 = vmax.f32 %v102, 0.0
  %106 = vst [vmem:[%s3] sm:$0xff] %v104
  %107 = vst [vmem:[%s3 + $0x8] sm:$0xff] %v105
  // Predicated region
  $region14: #{torchscript_wrapper_forward.1} parent=0 // pred_check
    _
  $region15: #{torchscript_wrapper_forward.1} parent=0 // pred_check_branch
    %109 = sbr.rel (0) target = $region17
  $region16: #{torchscript_wrapper_forward.1} parent=0 // pred_region
    _
  $region17: #{torchscript_wrapper_forward.1} parent=0 // pred_fallthru
    _
  // Predicated region
  $region18: #{torchscript_wrapper_forward.1} parent=0 // pred_check
    _
  $region19: #{torchscript_wrapper_forward.1} parent=0 // pred_check_branch
    %111 = sbr.rel (0) target = $region21
  $region20: #{torchscript_wrapper_forward.1} parent=0 // pred_region
    _
  $region21: #{torchscript_wrapper_forward.1} parent=0 // pred_fallthru
    _

</llo_original>
